<compile_context>
chip_gen: v7x
topology: tpu7x:2x2x1
jax: 0.10.0
libtpu: 0.0.40
codegen_flags: <defaults>
</compile_context>

<pallas_src>
import jax
import jax.numpy as jnp
from jax.experimental import pallas as pl
from jax.experimental.pallas import tpu as pltpu


# ---------------------------------------------------------------------------
# Pallas kernel: one (tm, Et) output slab = patches_tile @ resident_weight + bias
# ---------------------------------------------------------------------------
def _patch_embed_kernel(p_ref, w_ref, b_ref, o_ref):
    # p_ref: (tm, Kt)  patch slab (Kt = K padded to a multiple of 128)
    # w_ref: (Kt, Et)  full flattened conv weight — grid-invariant (VMEM-resident)
    # b_ref: (1,  Et)  bias — grid-invariant
    # o_ref: (tm, Et)  output slab — lane-dense across the full (padded) embed dim
    acc = jnp.dot(p_ref[...], w_ref[...], preferred_element_type=jnp.float32)
    o_ref[...] = (acc + b_ref[...].astype(jnp.float32)).astype(o_ref.dtype)


def _pick_block_m(M, Kt, Et, in_bytes, out_bytes, block_m, budget_bytes):
    """Largest M-tile whose (resident weight + double-buffered tiles) fit the budget."""
    weight_bytes = 2 * Kt * Et * in_bytes + 2 * Et * 4  # weight + bias (double-buffered)
    for tm in (512, 256, 128, 64, 32, 16, 8):
        if tm > block_m or tm > M:
            continue
        tile_bytes = 2 * tm * Kt * in_bytes + 2 * tm * Et * out_bytes
        if weight_bytes + tile_bytes <= budget_bytes:
            return tm
    return min(M, 8)  # tiny-M fallback (full-M block if M < 8)


# ---------------------------------------------------------------------------
# Wrapper: patchify (layout + cast, one fused XLA pass) + weight-resident GEMM
# ---------------------------------------------------------------------------
def patch_embed_pallas(x, weight, bias, *, temporal_patch_size, patch_size,
                       block_m=512, use_bf16_matmul=True,
                       vmem_budget_bytes=40 * 1024 * 1024):
    """x: [B, C, T, H, W]; weight: [E, C, tps, ps, ps]; bias: [E].

    Returns (tokens [B, N, E], (T', H', W')) matching PyTorch's
    (x.flatten(2).transpose(1, 2), x.size()[-3:]).
    """
    B, C, T, H, W = x.shape
    E = weight.shape[0]
    tps, ps = temporal_patch_size, patch_size
    assert T % tps == 0 and H % ps == 0 and W % ps == 0, "input must tile by patch size"
    Tp, Hp, Wp = T // tps, H // ps, W // ps
    N = Tp * Hp * Wp
    K = C * tps * ps * ps
    M = B * N

    in_dtype = jnp.bfloat16 if use_bf16_matmul else x.dtype
    out_dtype = x.dtype
    in_bytes = jnp.dtype(in_dtype).itemsize
    out_bytes = jnp.dtype(out_dtype).itemsize

    # Lane-dense padded reduction / embed dims (zero K-pad is a no-op for the dot).
    Kt = ((K + 127) // 128) * 128
    Et = ((E + 127) // 128) * 128

    # --- patch extraction: pure layout + dtype cast (single fused XLA pass).
    patches = x.reshape(B, C, Tp, tps, Hp, ps, Wp, ps)
    patches = patches.transpose(0, 2, 4, 6, 1, 3, 5, 7).astype(in_dtype)  # B,Tp,Hp,Wp,C,tps,ps,ps
    patches = patches.reshape(M, K)
    if Kt != K:
        patches = jnp.pad(patches, ((0, 0), (0, Kt - K)))

    # --- conv weight flattened once to [Kt, Et]; bias to [1, Et] (tiny).
    w2d = weight.reshape(E, K).T.astype(in_dtype)
    b2d = bias.reshape(1, E).astype(jnp.float32)
    if Kt != K or Et != E:
        w2d = jnp.pad(w2d, ((0, Kt - K), (0, Et - E)))
    if Et != E:
        b2d = jnp.pad(b2d, ((0, 0), (0, Et - E)))

    # --- M tile: no M padding; ragged last block is masked by Pallas.
    tm = _pick_block_m(M, Kt, Et, in_bytes, out_bytes, block_m, vmem_budget_bytes)
    grid_m = pl.cdiv(M, tm)

    cost = pl.CostEstimate(
        flops=2 * M * Kt * Et,
        transcendentals=0,
        bytes_accessed=M * Kt * in_bytes + Kt * Et * in_bytes + M * Et * out_bytes + Et * 4,
    )

    out = pl.pallas_call(
        _patch_embed_kernel,
        out_shape=jax.ShapeDtypeStruct((M, Et), out_dtype),
        grid_spec=pltpu.PrefetchScalarGridSpec(
            num_scalar_prefetch=0,
            grid=(grid_m,),
            in_specs=[
                pl.BlockSpec((tm, Kt), lambda i: (i, 0)),   # patches: streamed over M
                pl.BlockSpec((Kt, Et), lambda i: (0, 0)),   # weight: grid-invariant, resident
                pl.BlockSpec((1, Et), lambda i: (0, 0)),    # bias:   grid-invariant
            ],
            out_specs=pl.BlockSpec((tm, Et), lambda i: (i, 0)),
        ),
        compiler_params=pltpu.CompilerParams(
            dimension_semantics=("parallel",),              # both v7x TCs get M-tiles
            vmem_limit_bytes=48 * 1024 * 1024,              # above 16/32 MiB scoped defaults
            allow_input_fusion=[True, False, False],        # let XLA fuse patchify into the read
        ),
        cost_estimate=cost,
    )(patches, w2d, b2d)

    tokens = out[:, :E].reshape(B, N, E)
    return tokens, (Tp, Hp, Wp)


# ---------------------------------------------------------------------------
# PatchEmbed module equivalent
# ---------------------------------------------------------------------------
class PatchEmbed:
    """JAX/Pallas port of the PyTorch PatchEmbed (Conv3d patchify)."""

    def __init__(self, img_size=224, num_frames=16, patch_size=16,
                 temporal_patch_size=2, in_chans=3, embed_dim=768,
                 *, key=None, dtype=jnp.float32):
        num_patches = (img_size // patch_size) * (img_size // patch_size) * (
            num_frames // temporal_patch_size)
        self.img_size = img_size
        self.patch_size = patch_size
        self.num_patches = num_patches
        self.num_frames = num_frames
        self.temporal_patch_size = temporal_patch_size
        self.in_chans = in_chans
        self.embed_dim = embed_dim

        if key is None:
            key = jax.random.PRNGKey(0)
        kw, kb = jax.random.split(key)
        fan_in = in_chans * temporal_patch_size * patch_size * patch_size
        bound = 1.0 / (fan_in ** 0.5)
        # Same init family as torch Conv3d default (uniform in ±1/sqrt(fan_in)).
        self.weight = jax.random.uniform(
            kw, (embed_dim, in_chans, temporal_patch_size, patch_size, patch_size),
            minval=-bound, maxval=bound, dtype=dtype)
        self.bias = jax.random.uniform(
            kb, (embed_dim,), minval=-bound, maxval=bound, dtype=dtype)

    def __call__(self, x, *, use_bf16_matmul=True):
        return patch_embed_pallas(
            x, self.weight, self.bias,
            temporal_patch_size=self.temporal_patch_size,
            patch_size=self.patch_size,
            use_bf16_matmul=use_bf16_matmul)


# ---------------------------------------------------------------------------
# Plain-JAX reference (independent path through lax.conv_general_dilated)
# ---------------------------------------------------------------------------
def patch_embed_reference(x, weight, bias, *, temporal_patch_size, patch_size):
    y = jax.lax.conv_general_dilated(
        x, weight,
        window_strides=(temporal_patch_size, patch_size, patch_size),
        padding="VALID",
        dimension_numbers=("NCDHW", "OIDHW", "NCDHW"))
    y = y + bias[None, :, None, None, None]
    B, E, Tp, Hp, Wp = y.shape
    tokens = y.reshape(B, E, Tp * Hp * Wp).transpose(0, 2, 1)
    return tokens, (Tp, Hp, Wp)


if __name__ == "__main__":
    key = jax.random.PRNGKey(0)
    kx, kp = jax.random.split(key)

    # Small shapes consistent with the module: video [B, C, T, H, W]
    B, C, T, Hs, Ws = 2, 3, 4, 16, 16
    patch_size, temporal_patch_size, embed_dim = 4, 2, 128

    x = jax.random.normal(kx, (B, C, T, Hs, Ws), dtype=jnp.float32)

    module = PatchEmbed(img_size=Hs, num_frames=T, patch_size=patch_size,
                        temporal_patch_size=temporal_patch_size,
                        in_chans=C, embed_dim=embed_dim, key=kp)

    # Default fast path: bf16 MXU inputs, f32 accumulation.
    tokens, thw = module(x)
    tokens = jax.block_until_ready(tokens)

    # Exact-parity path: f32 matmul inputs.
    tokens_f32, thw_f32 = patch_embed_pallas(
        x, module.weight, module.bias,
        temporal_patch_size=temporal_patch_size, patch_size=patch_size,
        use_bf16_matmul=False)
    tokens_f32 = jax.block_until_ready(tokens_f32)

    ref_tokens, ref_thw = patch_embed_reference(
        x, module.weight, module.bias,
        temporal_patch_size=temporal_patch_size, patch_size=patch_size)
    ref_tokens = jax.block_until_ready(ref_tokens)

    assert tokens.shape == (B, module.num_patches, embed_dim), tokens.shape
    assert tuple(thw) == tuple(ref_thw) == tuple(thw_f32), (thw, thw_f32, ref_thw)

    err_f32 = jnp.max(jnp.abs(tokens_f32 - ref_tokens))
    assert err_f32 < 1e-3, f"f32 path mismatch vs reference: {err_f32}"

    err_bf16 = jnp.max(jnp.abs(tokens - ref_tokens))
    assert err_bf16 < 3e-2, f"bf16 path mismatch vs reference: {err_bf16}"

    print("KERNEL_OK")
</pallas_src>

<mosaic_0001>
module attributes {stable_mosaic.version = 11 : i64} {
  func.func @_patch_embed_kernel(%arg0: i32, %arg1: memref<64x128xbf16, #tpu.memory_space<vmem>>, %arg2: memref<128x128xbf16, #tpu.memory_space<vmem>>, %arg3: memref<1x128xf32, #tpu.memory_space<vmem>>, %arg4: memref<64x128xf32, #tpu.memory_space<vmem>>) attributes {dimension_semantics = [#tpu.dimension_semantics<parallel>], iteration_bounds = array<i64: 1>, scalar_prefetch = 0 : i64, scratch_operands = 0 : i64, tpu.core_type = #tpu.core_type<tc>, window_params = [{transform_indices = @transform_0, window_bounds = array<i64: 64, 128>}, {pipeline_mode = #tpu.pipeline_mode<synchronous>, transform_indices = @transform_1, window_bounds = array<i64: 128, 128>}, {pipeline_mode = #tpu.pipeline_mode<synchronous>, transform_indices = @transform_2, window_bounds = array<i64: 1, 128>}, {transform_indices = @transform_3, window_bounds = array<i64: 64, 128>}]} {
    %c0 = arith.constant 0 : index
    %c0_0 = arith.constant 0 : index
    %0 = vector.load %arg1[%c0, %c0_0] : memref<64x128xbf16, #tpu.memory_space<vmem>>, vector<64x128xbf16>
    %c0_1 = arith.constant 0 : index
    %c0_2 = arith.constant 0 : index
    %1 = vector.load %arg2[%c0_1, %c0_2] : memref<128x128xbf16, #tpu.memory_space<vmem>>, vector<128x128xbf16>
    %cst = arith.constant dense<0.000000e+00> : vector<64x128xf32>
    %2 = tpu.matmul %0, %1, %cst {dimension_numbers = #tpu.dot_dimension_numbers<[1], [0], [0], [1], [0, 0, 1, 1], [], []>} : vector<64x128xbf16>, vector<128x128xbf16>, vector<64x128xf32> -> vector<64x128xf32>
    %c0_3 = arith.constant 0 : index
    %c0_4 = arith.constant 0 : index
    %3 = vector.load %arg3[%c0_3, %c0_4] : memref<1x128xf32, #tpu.memory_space<vmem>>, vector<1x128xf32>
    %4 = vector.broadcast %3 : vector<1x128xf32> to vector<64x128xf32>
    %5 = arith.addf %2, %4 : vector<64x128xf32>
    %c0_5 = arith.constant 0 : index
    %c0_6 = arith.constant 0 : index
    %6 = vector.load %arg4[%c0_5, %c0_6] : memref<64x128xf32, #tpu.memory_space<vmem>>, vector<64x128xf32>
    tpu.vector_store %arg4[%c0_5, %c0_6], %5 {strides = array<i32>} : memref<64x128xf32, #tpu.memory_space<vmem>>, vector<64x128xf32>,
    return
  }
  func.func @transform_0(%arg0: i32) -> (i32, i32) {
    %c0_i32 = arith.constant 0 : i32
    %c0_i32_0 = arith.constant 0 : i32
    return %arg0, %c0_i32 : i32, i32
  }
  func.func @transform_1(%arg0: i32) -> (i32, i32) {
    %c0_i32 = arith.constant 0 : i32
    %c0_i32_0 = arith.constant 0 : i32
    %c0_i32_1 = arith.constant 0 : i32
    return %c0_i32, %c0_i32_0 : i32, i32
  }
  func.func @transform_2(%arg0: i32) -> (i32, i32) {
    %c0_i32 = arith.constant 0 : i32
    %c0_i32_0 = arith.constant 0 : i32
    %c0_i32_1 = arith.constant 0 : i32
    return %c0_i32, %c0_i32_0 : i32, i32
  }
  func.func @transform_3(%arg0: i32) -> (i32, i32) {
    %c0_i32 = arith.constant 0 : i32
    %c0_i32_0 = arith.constant 0 : i32
    return %arg0, %c0_i32 : i32, i32
  }
}

</mosaic_0001>

<llo_original>
// kernel: tpu_custom_call.1
$region0: #{tpu_custom_call.1}
  #allocation0 [shape = 'u32[]', space=smem, size = 0x4, offset = 0x4, fixed_abs, tag = 'smem constant byte address 0x4 - core index']
  #allocation1 [shape = 'u32[144,128]{1,0:T(1,128)}', space=vmem, size = 0x12000, scoped, tag = 'internal scratch']
  %s0 = inlined_call_operand.hbm [shape: bf16[64,128], index: 0, kind: input, shape index: {}]
  %s1 = inlined_call_operand.hbm [shape: bf16[128,128], index: 1, kind: input, shape index: {}]
  %s2 = inlined_call_operand.vmem [shape: f32[1,128], index: 2, kind: input, shape index: {}]
  %s3 = inlined_call_operand.hbm [shape: f32[64,128], index: 3, kind: output, shape index: {}]
  %s4 = sld [smem:[#allocation0]]
  $region30: #{tpu_custom_call.1} parent=0
    _
  %s6 = ssub.s32 1, %s4
  %s7 = scalar_select 0, %s6, %s4
  $region1: #{tpu_custom_call.1} parent=0
    #allocation2 [shape = 'u8[16384]{0}', space=vmem, size = 0x4000, scoped, tag = 'input window, operand 0, single buffered']
    #allocation3 [shape = 's32[1]{0}', space=sflag, size = 0x4, scoped, tag = 'scoped memory for tpu_custom_call.1']
    #allocation4 [shape = 's32[1]{0}', space=sflag, size = 0x4, scoped, tag = 'scoped memory for tpu_custom_call.1']
    #allocation5 [shape = 'u8[32768]{0}', space=vmem, size = 0x8000, scoped, tag = 'input window, operand 1, single buffered']
    #allocation6 [shape = 's32[1]{0}', space=sflag, size = 0x4, scoped, tag = 'scoped memory for tpu_custom_call.1']
    #allocation7 [shape = 'u8[32768]{0}', space=vmem, size = 0x8000, scoped, tag = 'output window, operand 0, single buffered']
    %8 = vsyncpa [#allocation3], 0
    %9 = vsyncpa [#allocation6], 0
    %10 = vsyncpa [#allocation4], 0
    // Predicated region
    $region2: #{tpu_custom_call.1} parent=1 // pred_check
      _
    $region3: #{tpu_custom_call.1} parent=1 // pred_check_branch
      %12 = sbr.rel (0) target = $region5
    $region4: #{tpu_custom_call.1} parent=1 // pred_region
      %s14 = ssub.s32 512, 512
      %15 = vsyncadd [#allocation3], %s14
      %s16 = sshll.u32 [#allocation2], 4
      %s17 = int_to_ptr.vmem [resolvable:$true] %s16
      %22 = dma.hbm_to_vmem [thread:$0]  %s0, 512, %s17, [#allocation3], 64, 64, 4
    $region5: #{tpu_custom_call.1} parent=1 // pred_fallthru
      _
    // Predicated region
    $region6: #{tpu_custom_call.1} parent=1 // pred_check
      _
    $region7: #{tpu_custom_call.1} parent=1 // pred_check_branch
      %24 = sbr.rel (0) target = $region9
    $region8: #{tpu_custom_call.1} parent=1 // pred_region
      %s26 = ssub.s32 1024, 1024
      %27 = vsyncadd [#allocation6], %s26
      %s28 = sshll.u32 [#allocation5], 4
      %s29 = int_to_ptr.vmem [resolvable:$true] %s28
      %34 = dma.hbm_to_vmem [thread:$0]  %s1, 1024, %s29, [#allocation6], 64, 64, 4
    $region9: #{tpu_custom_call.1} parent=1 // pred_fallthru
      _
    // Predicated region
    $region10: #{tpu_custom_call.1} parent=1 // pred_check
      _
    $region11: #{tpu_custom_call.1} parent=1 // pred_check_branch
      %36 = sbr.rel (0) target = $region13
    $region12: #{tpu_custom_call.1} parent=1 // pred_region
      _
    $region13: #{tpu_custom_call.1} parent=1 // pred_fallthru
      _
    // Predicated region
    $region14: #{tpu_custom_call.1} parent=1 // pred_check
      _
    $region15: #{tpu_custom_call.1} parent=1 // pred_check_branch
      %38 = sbr.rel (0) target = $region17
    $region16: #{tpu_custom_call.1} parent=1 // pred_region
      %39 = dma.done [#allocation3], 512
    $region17: #{tpu_custom_call.1} parent=1 // pred_fallthru
      _
    // Predicated region
    $region18: #{tpu_custom_call.1} parent=1 // pred_check
      _
    $region19: #{tpu_custom_call.1} parent=1 // pred_check_branch
      %41 = sbr.rel (0) target = $region21
    $region20: #{tpu_custom_call.1} parent=1 // pred_region
      %42 = dma.done [#allocation6], 1024
    $region21: #{tpu_custom_call.1} parent=1 // pred_fallthru
      _
    %v44 = vld [vmem:[#allocation2] sm:$0xf]
    %v45 = vld [vmem:[#allocation2 + $0x4] sm:$0xf]
    %v46 = vld [vmem:[#allocation2 + $0x8] sm:$0xf]
    %v47 = vld [vmem:[#allocation2 + $0xc] sm:$0xf]
    %v48 = vld [vmem:[#allocation2 + $0x10] sm:$0xf]
    %v49 = vld [vmem:[#allocation2 + $0x14] sm:$0xf]
    %v50 = vld [vmem:[#allocation2 + $0x18] sm:$0xf]
    %v51 = vld [vmem:[#allocation2 + $0x1c] sm:$0xf]
    %v52 = vld [vmem:[#allocation5] sm:$0xf]
    %v53 = vld [vmem:[#allocation5 + $0x4] sm:$0xf]
    %v54 = vld [vmem:[#allocation5 + $0x8] sm:$0xf]
    %v55 = vld [vmem:[#allocation5 + $0xc] sm:$0xf]
    %v56 = vld [vmem:[#allocation5 + $0x10] sm:$0xf]
    %v57 = vld [vmem:[#allocation5 + $0x14] sm:$0xf]
    %v58 = vld [vmem:[#allocation5 + $0x18] sm:$0xf]
    %v59 = vld [vmem:[#allocation5 + $0x1c] sm:$0xf]
    %v60 = vld [vmem:[#allocation5 + $0x20] sm:$0xf]
    %v61 = vld [vmem:[#allocation5 + $0x24] sm:$0xf]
    %v62 = vld [vmem:[#allocation5 + $0x28] sm:$0xf]
    %v63 = vld [vmem:[#allocation5 + $0x2c] sm:$0xf]
    %v64 = vld [vmem:[#allocation5 + $0x30] sm:$0xf]
    %v65 = vld [vmem:[#allocation5 + $0x34] sm:$0xf]
    %v66 = vld [vmem:[#allocation5 + $0x38] sm:$0xf]
    %v67 = vld [vmem:[#allocation5 + $0x3c] sm:$0xf]
    %v68 = vld [vmem:[%s2] sm:$0x1]
    %v70 = vlaneseq
    %v71 = vshrl.u32 %v70, 7
    %v72 = vsub.s32 0, %v71
    %v73 = vrot.slane %v68, %v72
    %v83 = vunpack.c.l.b16 %v44
    %v84 = vunpack.c.l.b16 %v45
    %v85 = vunpack.c.l.b16 %v46
    %v86 = vunpack.c.l.b16 %v47
    %v87 = vunpack.c.l.b16 %v48
    %v88 = vunpack.c.l.b16 %v49
    %v89 = vunpack.c.l.b16 %v50
    %v90 = vunpack.c.l.b16 %v51
    %v91 = vpack.c.b16 %v84, %v83
    %v92 = vpack.c.b16 %v86, %v85
    %v93 = vpack.c.b16 %v88, %v87
    %v94 = vpack.c.b16 %v90, %v89
    %v115 = vunpack.c.l.b16 %v52
    %v116 = vunpack.c.l.b16 %v53
    %v117 = vunpack.c.l.b16 %v54
    %v118 = vunpack.c.l.b16 %v55
    %v119 = vunpack.c.l.b16 %v56
    %v120 = vunpack.c.l.b16 %v57
    %v121 = vunpack.c.l.b16 %v58
    %v122 = vunpack.c.l.b16 %v59
    %v123 = vunpack.c.l.b16 %v60
    %v124 = vunpack.c.l.b16 %v61
    %v125 = vunpack.c.l.b16 %v62
    %v126 = vunpack.c.l.b16 %v63
    %v127 = vunpack.c.l.b16 %v64
    %v128 = vunpack.c.l.b16 %v65
    %v129 = vunpack.c.l.b16 %v66
    %v130 = vunpack.c.l.b16 %v67
    %v131 = vpack.c.b16 %v116, %v115
    %v132 = vpack.c.b16 %v118, %v117
    %v133 = vpack.c.b16 %v120, %v119
    %v134 = vpack.c.b16 %v122, %v121
    %v135 = vpack.c.b16 %v124, %v123
    %v136 = vpack.c.b16 %v126, %v125
    %v137 = vpack.c.b16 %v128, %v127
    %v138 = vpack.c.b16 %v130, %v129
    %147 = vmatprep.subr.bf16.mxu0 0
    %148 = vmatpush1.bf16.msra.mxu0 %v131
    %149 = vmatprep.subr.bf16.mxu0 0
    %150 = vmatpush1.bf16.msra.mxu0 %v132
    %151 = vmatprep.subr.bf16.mxu0 0
    %152 = vmatpush1.bf16.msra.mxu0 %v133
    %153 = vmatprep.subr.bf16.mxu0 0
    %154 = vmatpush1.bf16.msra.mxu0 %v134
    %155 = vmatprep.subr.bf16.mxu0 0
    %156 = vmatpush1.bf16.msra.mxu0 %v135
    %157 = vmatprep.subr.bf16.mxu0 0
    %158 = vmatpush1.bf16.msra.mxu0 %v136
    %159 = vmatprep.subr.bf16.mxu0 0
    %160 = vmatpush1.bf16.msra.mxu0 %v137
    %161 = vmatprep.subr.bf16.mxu0 0
    %162 = vmatpush1.bf16.msra.mxu0 %v138
    %163 = vmatprep.subr.bf16.mxu0 0
    %164 = vmatpush1.bf16.msra.mxu0 0
    %165 = vmatprep.subr.bf16.mxu0 0
    %166 = vmatpush1.bf16.msra.mxu0 0
    %167 = vmatprep.subr.bf16.mxu0 0
    %168 = vmatpush1.bf16.msra.mxu0 0
    %169 = vmatprep.subr.bf16.mxu0 0
    %170 = vmatpush1.bf16.msra.mxu0 0
    %171 = vmatprep.subr.bf16.mxu0 0
    %172 = vmatpush1.bf16.msra.mxu0 0
    %173 = vmatprep.subr.bf16.mxu0 0
    %174 = vmatpush1.bf16.msra.mxu0 0
    %175 = vmatprep.subr.bf16.mxu0 0
    %176 = vmatpush1.bf16.msra.mxu0 0
    %177 = vmatprep.subr.bf16.mxu0 0
    %178 = vmatpush1.bf16.msra.mxu0 0
    %179 = vmatprep.mubr.bf16.mxu0 0
    %180 = vmatmul.mubr.bf16.gmra.mrb[0].mxu0 %v91
    %v181 = vpop.f32.mrb[0].mxu0
    %v182 = vadd.f32 %v73, %v181
    %v183 = vpop.f32.mrb[0].mxu0
    %v184 = vpop.f32.mrb[0].mxu0
    %v185 = vadd.f32 %v73, %v184
    %v186 = vpop.f32.mrb[0].mxu0
    %187 = vmatprep.mubr.bf16.mxu0 0
    %188 = vmatmul.mubr.bf16.gmra.mrb[0].mxu0 %v92
    %v189 = vpop.f32.mrb[0].mxu0
    %v190 = vadd.f32 %v73, %v189
    %v191 = vpop.f32.mrb[0].mxu0
    %v192 = vpop.f32.mrb[0].mxu0
    %v193 = vadd.f32 %v73, %v192
    %v194 = vpop.f32.mrb[0].mxu0
    %195 = vmatprep.mubr.bf16.mxu0 0
    %196 = vmatmul.mubr.bf16.gmra.mrb[0].mxu0 %v93
    %v197 = vpop.f32.mrb[0].mxu0
    %v198 = vadd.f32 %v73, %v197
    %v199 = vpop.f32.mrb[0].mxu0
    %v200 = vpop.f32.mrb[0].mxu0
    %v201 = vadd.f32 %v73, %v200
    %v202 = vpop.f32.mrb[0].mxu0
    %203 = vmatprep.mubr.bf16.mxu0 0
    %204 = vmatmul.mubr.bf16.gmra.mrb[0].mxu0 %v94
    %v205 = vpop.f32.mrb[0].mxu0
    %v206 = vadd.f32 %v73, %v205
    %v207 = vpop.f32.mrb[0].mxu0
    %v208 = vpop.f32.mrb[0].mxu0
    %v209 = vadd.f32 %v73, %v208
    %v210 = vpop.f32.mrb[0].mxu0
    %211 = vdwg.mxu0
    %212 = vst [vmem:[#allocation7] sm:$0xff] %v182
    %213 = vst [vmem:[#allocation7 + $0x8] sm:$0xff] %v185
    %214 = vst [vmem:[#allocation7 + $0x10] sm:$0xff] %v190
    %215 = vst [vmem:[#allocation7 + $0x18] sm:$0xff] %v193
    %216 = vst [vmem:[#allocation7 + $0x20] sm:$0xff] %v198
    %217 = vst [vmem:[#allocation7 + $0x28] sm:$0xff] %v201
    %218 = vst [vmem:[#allocation7 + $0x30] sm:$0xff] %v206
    %219 = vst [vmem:[#allocation7 + $0x38] sm:$0xff] %v209
    // Predicated region
    $region22: #{tpu_custom_call.1} parent=1 // pred_check
      _
    $region23: #{tpu_custom_call.1} parent=1 // pred_check_branch
      %221 = sbr.rel (0) target = $region25
    $region24: #{tpu_custom_call.1} parent=1 // pred_region
      %s223 = ssub.s32 1024, 1024
      %224 = vsyncadd [#allocation4], %s223
      %s225 = sshll.u32 [#allocation7], 4
      %s226 = int_to_ptr.vmem [resolvable:$true] %s225
      %231 = dma.vmem_to_hbm [thread:$0]  %s226, 1024, %s3, [#allocation4], 128, 128, 8
    $region25: #{tpu_custom_call.1} parent=1 // pred_fallthru
      _
    // Predicated region
    $region26: #{tpu_custom_call.1} parent=1 // pred_check
      _
    $region27: #{tpu_custom_call.1} parent=1 // pred_check_branch
      %233 = sbr.rel (0) target = $region29
    $region28: #{tpu_custom_call.1} parent=1 // pred_region
      %234 = dma.done [#allocation4], 1024
    $region29: #{tpu_custom_call.1} parent=1 // pred_fallthru
      _
    %235 = vsyncpa [#allocation3], 1
    %236 = vsyncpa [#allocation6], 1
    %237 = vsyncpa [#allocation4], 1

</llo_original>
